<compile_context>
chip_gen: v7x
topology: tpu7x:2x2x1
jax: 0.10.0
libtpu: 0.0.40
codegen_flags: <defaults>
</compile_context>

<pallas_src>
import functools

import jax
import jax.numpy as jnp
from jax import lax
from jax.experimental import pallas as pl
from jax.experimental.pallas import tpu as pltpu

# ----------------------------- config ("args") ------------------------------
USER = 8
ITEM = 8
LATDIM = 32
HYPER_NUM = 16
GNN_LAYER = 2
LEAKY = 0.5


def _leaky_relu(x, slope):
    return jnp.where(x >= 0, x, slope * x)


# ------------------------------ fused kernel --------------------------------
def fused_forward_kernel(adj_ref, embeds_ref, hyper_ref, z_ref,
                         tem_ref, *hl_refs, slope, gnn_layer):
    """Entire OrgModel forward (keepRate == 1.0) in one kernel invocation.

    Inputs (all fully VMEM-resident):
      adj_ref    : (N, N)
      embeds_ref : (N, latdim)   cat(uEmbeds, iEmbeds)
      hyper_ref  : (latdim, hyperNum)
      z_ref      : (N, latdim)   zishiying
    Outputs:
      tem_ref    : (N, latdim)   final GCN embeddings (temEmbeds)
      hl_refs[l] : (N, latdim)   HyperLats[l], l = 0..gnn_layer-1
    """
    adj = adj_ref[...]
    embeds = embeds_ref[...]

    # allHyper = embeds @ Hyper                                   (N, hyperNum)
    all_hyper = jnp.dot(embeds, hyper_ref[...],
                        preferred_element_type=jnp.float32)

    # layer-invariant adaptive gate: 2*sigmoid(z) - 1 == tanh(z/2)  (one EUP op)
    aij = jnp.tanh(z_ref[...] * 0.5)

    cur = embeds
    tem = None
    for l in range(gnn_layer):
        # ---- GCN: leaky(adj @ (cur * aij)) ----
        tem = _leaky_relu(
            jnp.dot(adj, cur * aij, preferred_element_type=jnp.float32),
            slope)
        # ---- HGNN: lat = leaky(allHyper.T @ cur) (no materialized transpose) ----
        lat = _leaky_relu(
            lax.dot_general(all_hyper, cur,
                            dimension_numbers=(((0,), (0,)), ((), ())),
                            preferred_element_type=jnp.float32),
            slope)                                                # (hyperNum, latdim)
        # ---- HGNN: hl = leaky(allHyper @ lat) ----
        hl = _leaky_relu(
            jnp.dot(all_hyper, lat, preferred_element_type=jnp.float32),
            slope)                                                # (N, latdim)
        hl_refs[l][...] = hl
        cur = hl + tem

    tem_ref[...] = tem


# ------------------------------ kernel wrapper -------------------------------
@functools.partial(jax.jit, static_argnames=("keep_rate",))
def org_model_forward(params, adj, keep_rate=1.0):
    assert keep_rate == 1.0, "only the keepRate==1.0 (predict) path is supported"
    embeds = jnp.concatenate([params["uEmbeds"], params["iEmbeds"]], axis=0)
    N = embeds.shape[0]

    vmem = pl.BlockSpec(memory_space=pltpu.MemorySpace.VMEM)
    out_shapes = tuple(jax.ShapeDtypeStruct((N, LATDIM), jnp.float32)
                       for _ in range(GNN_LAYER + 1))

    outs = pl.pallas_call(
        functools.partial(fused_forward_kernel, slope=LEAKY,
                          gnn_layer=GNN_LAYER),
        out_shape=out_shapes,
        in_specs=[vmem, vmem, vmem, vmem],
        out_specs=tuple(pl.BlockSpec(memory_space=pltpu.MemorySpace.VMEM)
                        for _ in range(GNN_LAYER + 1)),
    )(adj, embeds, params["Hyper"], params["zishiying"])

    tem_embeds = outs[0]
    hyper_lats = list(outs[1:])
    return tem_embeds, hyper_lats


# --------------------------------- params ------------------------------------
def xavier_uniform(key, shape):
    fan_in, fan_out = shape[0], shape[1]
    bound = (6.0 / (fan_in + fan_out)) ** 0.5
    return jax.random.uniform(key, shape, jnp.float32, -bound, bound)


def init_params(key):
    k1, k2, k3, k4 = jax.random.split(key, 4)
    return {
        "uEmbeds": xavier_uniform(k1, (USER, LATDIM)),
        "iEmbeds": xavier_uniform(k2, (ITEM, LATDIM)),
        "Hyper": xavier_uniform(k3, (LATDIM, HYPER_NUM)),
        "zishiying": xavier_uniform(k4, (USER + ITEM, LATDIM)),
    }


# ------------------------------- reference ----------------------------------
def org_model_forward_ref(params, adj):
    embeds = jnp.concatenate([params["uEmbeds"], params["iEmbeds"]], axis=0)
    all_hyper = embeds @ params["Hyper"]
    lats = [embeds]
    hyper_lats = []
    tem = None
    for _ in range(GNN_LAYER):
        aij = jax.nn.sigmoid(params["zishiying"]) * 2.0 - 1.0
        tem = _leaky_relu(adj @ (lats[-1] * aij), LEAKY)
        lat = _leaky_relu(all_hyper.T @ lats[-1], LEAKY)
        hl = _leaky_relu(all_hyper @ lat, LEAKY)
        hyper_lats.append(hl)
        lats.append(hl + tem)
    return tem, hyper_lats


# ---------------------------------- main -------------------------------------
if __name__ == "__main__":
    key = jax.random.PRNGKey(0)
    kp, ka = jax.random.split(key)
    params = init_params(kp)

    N = USER + ITEM
    # deterministic dense "adjacency" (densified sparse matrix)
    adj = (jax.random.uniform(ka, (N, N)) < 0.3).astype(jnp.float32)
    adj = adj / jnp.maximum(adj.sum(axis=1, keepdims=True), 1.0)

    out_embeds, hyper_lats = org_model_forward(params, adj, keep_rate=1.0)
    out_embeds = jax.block_until_ready(out_embeds)
    hyper_lats = [jax.block_until_ready(h) for h in hyper_lats]

    ref_embeds, ref_hyper = org_model_forward_ref(params, adj)
    assert out_embeds.shape == (N, LATDIM)
    assert len(hyper_lats) == GNN_LAYER
    assert jnp.allclose(out_embeds, ref_embeds, atol=1e-5, rtol=1e-5)
    for a, b in zip(hyper_lats, ref_hyper):
        assert jnp.allclose(a, b, atol=1e-5, rtol=1e-5)

    print("KERNEL_OK")
</pallas_src>

<mosaic_0001>
module attributes {stable_mosaic.version = 11 : i64} {
  func.func @fused_forward_kernel(%arg0: memref<16x16xf32, #tpu.memory_space<vmem>>, %arg1: memref<16x32xf32, #tpu.memory_space<vmem>>, %arg2: memref<32x16xf32, #tpu.memory_space<vmem>>, %arg3: memref<16x32xf32, #tpu.memory_space<vmem>>, %arg4: memref<16x32xf32, #tpu.memory_space<vmem>>, %arg5: memref<16x32xf32, #tpu.memory_space<vmem>>, %arg6: memref<16x32xf32, #tpu.memory_space<vmem>>) attributes {dimension_semantics = [], scalar_prefetch = 0 : i64, scratch_operands = 0 : i64, tpu.core_type = #tpu.core_type<tc>} {
    %c0 = arith.constant 0 : index
    %c0_0 = arith.constant 0 : index
    %0 = vector.load %arg0[%c0, %c0_0] : memref<16x16xf32, #tpu.memory_space<vmem>>, vector<16x16xf32>
    %c0_1 = arith.constant 0 : index
    %c0_2 = arith.constant 0 : index
    %1 = vector.load %arg1[%c0_1, %c0_2] : memref<16x32xf32, #tpu.memory_space<vmem>>, vector<16x32xf32>
    %c0_3 = arith.constant 0 : index
    %c0_4 = arith.constant 0 : index
    %2 = vector.load %arg2[%c0_3, %c0_4] : memref<32x16xf32, #tpu.memory_space<vmem>>, vector<32x16xf32>
    %cst = arith.constant dense<0.000000e+00> : vector<16x16xf32>
    %3 = tpu.matmul %1, %2, %cst {dimension_numbers = #tpu.dot_dimension_numbers<[1], [0], [0], [1], [0, 0, 1, 1], [], []>} : vector<16x32xf32>, vector<32x16xf32>, vector<16x16xf32> -> vector<16x16xf32>
    %c0_5 = arith.constant 0 : index
    %c0_6 = arith.constant 0 : index
    %4 = vector.load %arg3[%c0_5, %c0_6] : memref<16x32xf32, #tpu.memory_space<vmem>>, vector<16x32xf32>
    %cst_7 = arith.constant 5.000000e-01 : f32
    %5 = vector.broadcast %cst_7 : f32 to vector<16x32xf32>
    %6 = arith.mulf %4, %5 : vector<16x32xf32>
    %7 = math.tanh %6 : vector<16x32xf32>
    %8 = arith.mulf %1, %7 : vector<16x32xf32>
    %cst_8 = arith.constant dense<0.000000e+00> : vector<16x32xf32>
    %9 = tpu.matmul %0, %8, %cst_8 {dimension_numbers = #tpu.dot_dimension_numbers<[1], [0], [0], [1], [0, 0, 1, 1], [], []>} : vector<16x16xf32>, vector<16x32xf32>, vector<16x32xf32> -> vector<16x32xf32>
    %cst_9 = arith.constant 0.000000e+00 : f32
    %10 = vector.broadcast %cst_9 : f32 to vector<16x32xf32>
    %11 = arith.cmpf oge, %9, %10 : vector<16x32xf32>
    %cst_10 = arith.constant 5.000000e-01 : f32
    %12 = vector.broadcast %cst_10 : f32 to vector<16x32xf32>
    %13 = arith.mulf %12, %9 : vector<16x32xf32>
    %14 = arith.select %11, %9, %13 : vector<16x32xi1>, vector<16x32xf32>
    %cst_11 = arith.constant dense<0.000000e+00> : vector<16x32xf32>
    %15 = tpu.matmul %3, %1, %cst_11 {dimension_numbers = #tpu.dot_dimension_numbers<[0], [0], [1], [1], [0, 1, 1, 1], [], []>} : vector<16x16xf32>, vector<16x32xf32>, vector<16x32xf32> -> vector<16x32xf32>
    %cst_12 = arith.constant 0.000000e+00 : f32
    %16 = vector.broadcast %cst_12 : f32 to vector<16x32xf32>
    %17 = arith.cmpf oge, %15, %16 : vector<16x32xf32>
    %cst_13 = arith.constant 5.000000e-01 : f32
    %18 = vector.broadcast %cst_13 : f32 to vector<16x32xf32>
    %19 = arith.mulf %18, %15 : vector<16x32xf32>
    %20 = arith.select %17, %15, %19 : vector<16x32xi1>, vector<16x32xf32>
    %cst_14 = arith.constant dense<0.000000e+00> : vector<16x32xf32>
    %21 = tpu.matmul %3, %20, %cst_14 {dimension_numbers = #tpu.dot_dimension_numbers<[1], [0], [0], [1], [0, 0, 1, 1], [], []>} : vector<16x16xf32>, vector<16x32xf32>, vector<16x32xf32> -> vector<16x32xf32>
    %cst_15 = arith.constant 0.000000e+00 : f32
    %22 = vector.broadcast %cst_15 : f32 to vector<16x32xf32>
    %23 = arith.cmpf oge, %21, %22 : vector<16x32xf32>
    %cst_16 = arith.constant 5.000000e-01 : f32
    %24 = vector.broadcast %cst_16 : f32 to vector<16x32xf32>
    %25 = arith.mulf %24, %21 : vector<16x32xf32>
    %26 = arith.select %23, %21, %25 : vector<16x32xi1>, vector<16x32xf32>
    %c0_17 = arith.constant 0 : index
    %c0_18 = arith.constant 0 : index
    %27 = vector.load %arg5[%c0_17, %c0_18] : memref<16x32xf32, #tpu.memory_space<vmem>>, vector<16x32xf32>
    tpu.vector_store %arg5[%c0_17, %c0_18], %26 {strides = array<i32>} : memref<16x32xf32, #tpu.memory_space<vmem>>, vector<16x32xf32>,
    %28 = arith.addf %26, %14 : vector<16x32xf32>
    %29 = arith.mulf %28, %7 : vector<16x32xf32>
    %cst_19 = arith.constant dense<0.000000e+00> : vector<16x32xf32>
    %30 = tpu.matmul %0, %29, %cst_19 {dimension_numbers = #tpu.dot_dimension_numbers<[1], [0], [0], [1], [0, 0, 1, 1], [], []>} : vector<16x16xf32>, vector<16x32xf32>, vector<16x32xf32> -> vector<16x32xf32>
    %cst_20 = arith.constant 0.000000e+00 : f32
    %31 = vector.broadcast %cst_20 : f32 to vector<16x32xf32>
    %32 = arith.cmpf oge, %30, %31 : vector<16x32xf32>
    %cst_21 = arith.constant 5.000000e-01 : f32
    %33 = vector.broadcast %cst_21 : f32 to vector<16x32xf32>
    %34 = arith.mulf %33, %30 : vector<16x32xf32>
    %35 = arith.select %32, %30, %34 : vector<16x32xi1>, vector<16x32xf32>
    %cst_22 = arith.constant dense<0.000000e+00> : vector<16x32xf32>
    %36 = tpu.matmul %3, %28, %cst_22 {dimension_numbers = #tpu.dot_dimension_numbers<[0], [0], [1], [1], [0, 1, 1, 1], [], []>} : vector<16x16xf32>, vector<16x32xf32>, vector<16x32xf32> -> vector<16x32xf32>
    %cst_23 = arith.constant 0.000000e+00 : f32
    %37 = vector.broadcast %cst_23 : f32 to vector<16x32xf32>
    %38 = arith.cmpf oge, %36, %37 : vector<16x32xf32>
    %cst_24 = arith.constant 5.000000e-01 : f32
    %39 = vector.broadcast %cst_24 : f32 to vector<16x32xf32>
    %40 = arith.mulf %39, %36 : vector<16x32xf32>
    %41 = arith.select %38, %36, %40 : vector<16x32xi1>, vector<16x32xf32>
    %cst_25 = arith.constant dense<0.000000e+00> : vector<16x32xf32>
    %42 = tpu.matmul %3, %41, %cst_25 {dimension_numbers = #tpu.dot_dimension_numbers<[1], [0], [0], [1], [0, 0, 1, 1], [], []>} : vector<16x16xf32>, vector<16x32xf32>, vector<16x32xf32> -> vector<16x32xf32>
    %cst_26 = arith.constant 0.000000e+00 : f32
    %43 = vector.broadcast %cst_26 : f32 to vector<16x32xf32>
    %44 = arith.cmpf oge, %42, %43 : vector<16x32xf32>
    %cst_27 = arith.constant 5.000000e-01 : f32
    %45 = vector.broadcast %cst_27 : f32 to vector<16x32xf32>
    %46 = arith.mulf %45, %42 : vector<16x32xf32>
    %47 = arith.select %44, %42, %46 : vector<16x32xi1>, vector<16x32xf32>
    %c0_28 = arith.constant 0 : index
    %c0_29 = arith.constant 0 : index
    %48 = vector.load %arg6[%c0_28, %c0_29] : memref<16x32xf32, #tpu.memory_space<vmem>>, vector<16x32xf32>
    tpu.vector_store %arg6[%c0_28, %c0_29], %47 {strides = array<i32>} : memref<16x32xf32, #tpu.memory_space<vmem>>, vector<16x32xf32>,
    %c0_30 = arith.constant 0 : index
    %c0_31 = arith.constant 0 : index
    %49 = vector.load %arg4[%c0_30, %c0_31] : memref<16x32xf32, #tpu.memory_space<vmem>>, vector<16x32xf32>
    tpu.vector_store %arg4[%c0_30, %c0_31], %35 {strides = array<i32>} : memref<16x32xf32, #tpu.memory_space<vmem>>, vector<16x32xf32>,
    return
  }
}

</mosaic_0001>

<llo_original>
// kernel: org_model_forward.1
$region0: #{org_model_forward.1}
  #allocation0 [shape = 'u32[]', space=smem, size = 0x4, offset = 0x4, fixed_abs, tag = 'smem constant byte address 0x4 - core index']
  #allocation1 [shape = 'u32[144,128]{1,0:T(1,128)}', space=vmem, size = 0x12000, scoped, tag = 'internal scratch']
  %s0 = inlined_call_operand.vmem [shape: f32[16,16], index: 0, kind: input, shape index: {}]
  %s1 = inlined_call_operand.vmem [shape: f32[16,32], index: 1, kind: input, shape index: {}]
  %s2 = inlined_call_operand.vmem [shape: f32[32,16], index: 2, kind: input, shape index: {}]
  %s3 = inlined_call_operand.vmem [shape: f32[16,32], index: 3, kind: input, shape index: {}]
  %s4 = inlined_call_operand.hbm [shape: f32[16,32], index: 4, kind: output, shape index: {0}]
  %s5 = inlined_call_operand.hbm [shape: f32[16,32], index: 5, kind: output, shape index: {1}]
  %s6 = inlined_call_operand.hbm [shape: f32[16,32], index: 6, kind: output, shape index: {2}]
  %7 = xla_tuple %s4, %s5, %s6
  %s8 = sld [smem:[#allocation0]]
  $region42: #{org_model_forward.1} parent=0
    _
  %s10 = ssub.s32 1, %s8
  %s11 = scalar_select 0, %s10, %s8
  $region1: #{org_model_forward.1} parent=0
    #allocation2 [shape = 'u8[8192]{0}', space=vmem, size = 0x2000, scoped, tag = 'output window, operand 0, single buffered']
    #allocation3 [shape = 's32[1]{0}', space=sflag, size = 0x4, scoped, tag = 'scoped memory for org_model_forward.1']
    #allocation4 [shape = 'u8[8192]{0}', space=vmem, size = 0x2000, scoped, tag = 'output window, operand 1, single buffered']
    #allocation5 [shape = 's32[1]{0}', space=sflag, size = 0x4, scoped, tag = 'scoped memory for org_model_forward.1']
    #allocation6 [shape = 'u8[8192]{0}', space=vmem, size = 0x2000, scoped, tag = 'output window, operand 2, single buffered']
    %12 = vsyncpa [#allocation3], 0
    %13 = vsyncpa [#allocation5], 0
    // Predicated region
    $region2: #{org_model_forward.1} parent=1 // pred_check
      _
    $region3: #{org_model_forward.1} parent=1 // pred_check_branch
      %15 = sbr.rel (0) target = $region5
    $region4: #{org_model_forward.1} parent=1 // pred_region
      _
    $region5: #{org_model_forward.1} parent=1 // pred_fallthru
      _
    // Predicated region
    $region6: #{org_model_forward.1} parent=1 // pred_check
      _
    $region7: #{org_model_forward.1} parent=1 // pred_check_branch
      %17 = sbr.rel (0) target = $region9
    $region8: #{org_model_forward.1} parent=1 // pred_region
      _
    $region9: #{org_model_forward.1} parent=1 // pred_fallthru
      _
    // Predicated region
    $region10: #{org_model_forward.1} parent=1 // pred_check
      _
    $region11: #{org_model_forward.1} parent=1 // pred_check_branch
      %19 = sbr.rel (0) target = $region13
    $region12: #{org_model_forward.1} parent=1 // pred_region
      _
    $region13: #{org_model_forward.1} parent=1 // pred_fallthru
      _
    // Predicated region
    $region14: #{org_model_forward.1} parent=1 // pred_check
      _
    $region15: #{org_model_forward.1} parent=1 // pred_check_branch
      %21 = sbr.rel (0) target = $region17
    $region16: #{org_model_forward.1} parent=1 // pred_region
      _
    $region17: #{org_model_forward.1} parent=1 // pred_fallthru
      _
    %v22 = vld [vmem:[%s0] sm:$0xff]
    %v23 = vld [vmem:[%s0 + $0x8] sm:$0xff]
    %v24 = vld [vmem:[%s1] sm:$0xff]
    %v25 = vld [vmem:[%s1 + $0x8] sm:$0xff]
    %v26 = vld [vmem:[%s2] sm:$0xff]
    %v27 = vld [vmem:[%s2 + $0x8] sm:$0xff]
    %v28 = vld [vmem:[%s2 + $0x10] sm:$0xff]
    %v29 = vld [vmem:[%s2 + $0x18] sm:$0xff]
    %vm30 = vcmask 261120
    %v32 = vsel %vm30, %v24, 0
    %v35 = vsel %vm30, %v25, 0
    %37 = vmatprep.subr.mxu0 0.0
    %38 = vmatpush1.msra.mxu0 %v26
    %39 = vmatprep.subr.mxu0 0.0
    %40 = vmatpush1.msra.mxu0 %v27
    %41 = vmatprep.subr.mxu0 0.0
    %42 = vmatpush1.msra.mxu0 %v28
    %43 = vmatprep.subr.mxu0 0.0
    %44 = vmatpush1.msra.mxu0 %v29
    %45 = vmatprep.subr.mxu0 0.0
    %46 = vmatpush1.msra.mxu0 0.0
    %47 = vmatprep.subr.mxu0 0.0
    %48 = vmatpush1.msra.mxu0 0.0
    %49 = vmatprep.subr.mxu0 0.0
    %50 = vmatpush1.msra.mxu0 0.0
    %51 = vmatprep.subr.mxu0 0.0
    %52 = vmatpush1.msra.mxu0 0.0
    %53 = vmatprep.subr.mxu0 0.0
    %54 = vmatpush1.msra.mxu0 0.0
    %55 = vmatprep.subr.mxu0 0.0
    %56 = vmatpush1.msra.mxu0 0.0
    %57 = vmatprep.subr.mxu0 0.0
    %58 = vmatpush1.msra.mxu0 0.0
    %59 = vmatprep.subr.mxu0 0.0
    %60 = vmatpush1.msra.mxu0 0.0
    %61 = vmatprep.subr.mxu0 0.0
    %62 = vmatpush1.msra.mxu0 0.0
    %63 = vmatprep.subr.mxu0 0.0
    %64 = vmatpush1.msra.mxu0 0.0
    %65 = vmatprep.subr.mxu0 0.0
    %66 = vmatpush1.msra.mxu0 0.0
    %67 = vmatprep.subr.mxu0 0.0
    %68 = vmatpush1.msra.mxu0 0.0
    %69 = vmatprep.subr.mxu0 0.0
    %70 = vmatpush1.msra.mxu0 0.0
    %71 = vmatprep.subr.mxu0 0.0
    %72 = vmatpush1.msra.mxu0 0.0
    %73 = vmatprep.subr.mxu0 0.0
    %74 = vmatpush1.msra.mxu0 0.0
    %75 = vmatprep.subr.mxu0 0.0
    %76 = vmatpush1.msra.mxu0 0.0
    %77 = vmatprep.subr.mxu0 0.0
    %78 = vmatpush1.msra.mxu0 0.0
    %79 = vmatprep.subr.mxu0 0.0
    %80 = vmatpush1.msra.mxu0 0.0
    %81 = vmatprep.subr.mxu0 0.0
    %82 = vmatpush1.msra.mxu0 0.0
    %83 = vmatprep.subr.mxu0 0.0
    %84 = vmatpush1.msra.mxu0 0.0
    %85 = vmatprep.subr.mxu0 0.0
    %86 = vmatpush1.msra.mxu0 0.0
    %87 = vmatprep.subr.mxu0 0.0
    %88 = vmatpush1.msra.mxu0 0.0
    %89 = vmatprep.subr.mxu0 0.0
    %90 = vmatpush1.msra.mxu0 0.0
    %91 = vmatprep.subr.mxu0 0.0
    %92 = vmatpush1.msra.mxu0 0.0
    %93 = vmatprep.subr.mxu0 0.0
    %94 = vmatpush1.msra.mxu0 0.0
    %95 = vmatprep.subr.mxu0 0.0
    %96 = vmatpush1.msra.mxu0 0.0
    %97 = vmatprep.subr.mxu0 0.0
    %98 = vmatpush1.msra.mxu0 0.0
    %99 = vmatprep.subr.mxu0 0.0
    %100 = vmatpush1.msra.mxu0 0.0
    %101 = vmatprep.mubr.f32.mxu0 0.0
    %102 = vmatmul.mubr.f32.gmra.mrb[0].mxu0 %v32
    %v103 = vpop.f32.mrb[0].mxu0
    %v104 = vadd.f32 0.0, %v103
    %v105 = vpop.f32.mrb[0].mxu0
    %106 = vmatprep.mubr.f32.mxu0 0.0
    %107 = vmatmul.mubr.f32.gmra.mrb[0].mxu0 %v35
    %v108 = vpop.f32.mrb[0].mxu0
    %v109 = vadd.f32 0.0, %v108
    %v110 = vpop.f32.mrb[0].mxu0
    %111 = vdwg.mxu0
    %v112 = vld [vmem:[%s3] sm:$0xff]
    %v113 = vld [vmem:[%s3 + $0x8] sm:$0xff]
    %v114 = vmul.f32 %v112, 0.5
    %v115 = vmul.f32 %v113, 0.5
    %v116 = vtanh.pop %v114
    %v117 = vtanh.pop %v115
    %v118 = vmul.f32 %v24, %v116
    %v119 = vmul.f32 %v25, %v117
    %vm120 = vcmask 130048
    %v122 = vsel %vm120, %v22, 0
    %v125 = vsel %vm120, %v23, 0
    %127 = vmatprep.subr.mxu0 0.0
    %128 = vmatpush1.msra.mxu0 %v118
    %129 = vmatprep.subr.mxu0 0.0
    %130 = vmatpush1.msra.mxu0 %v119
    %131 = vmatprep.subr.mxu0 0.0
    %132 = vmatpush1.msra.mxu0 0.0
    %133 = vmatprep.subr.mxu0 0.0
    %134 = vmatpush1.msra.mxu0 0.0
    %135 = vmatprep.subr.mxu0 0.0
    %136 = vmatpush1.msra.mxu0 0.0
    %137 = vmatprep.subr.mxu0 0.0
    %138 = vmatpush1.msra.mxu0 0.0
    %139 = vmatprep.subr.mxu0 0.0
    %140 = vmatpush1.msra.mxu0 0.0
    %141 = vmatprep.subr.mxu0 0.0
    %142 = vmatpush1.msra.mxu0 0.0
    %143 = vmatprep.subr.mxu0 0.0
    %144 = vmatpush1.msra.mxu0 0.0
    %145 = vmatprep.subr.mxu0 0.0
    %146 = vmatpush1.msra.mxu0 0.0
    %147 = vmatprep.subr.mxu0 0.0
    %148 = vmatpush1.msra.mxu0 0.0
    %149 = vmatprep.subr.mxu0 0.0
    %150 = vmatpush1.msra.mxu0 0.0
    %151 = vmatprep.subr.mxu0 0.0
    %152 = vmatpush1.msra.mxu0 0.0
    %153 = vmatprep.subr.mxu0 0.0
    %154 = vmatpush1.msra.mxu0 0.0
    %155 = vmatprep.subr.mxu0 0.0
    %156 = vmatpush1.msra.mxu0 0.0
    %157 = vmatprep.subr.mxu0 0.0
    %158 = vmatpush1.msra.mxu0 0.0
    %159 = vmatprep.subr.mxu0 0.0
    %160 = vmatpush1.msra.mxu0 0.0
    %161 = vmatprep.subr.mxu0 0.0
    %162 = vmatpush1.msra.mxu0 0.0
    %163 = vmatprep.subr.mxu0 0.0
    %164 = vmatpush1.msra.mxu0 0.0
    %165 = vmatprep.subr.mxu0 0.0
    %166 = vmatpush1.msra.mxu0 0.0
    %167 = vmatprep.subr.mxu0 0.0
    %168 = vmatpush1.msra.mxu0 0.0
    %169 = vmatprep.subr.mxu0 0.0
    %170 = vmatpush1.msra.mxu0 0.0
    %171 = vmatprep.subr.mxu0 0.0
    %172 = vmatpush1.msra.mxu0 0.0
    %173 = vmatprep.subr.mxu0 0.0
    %174 = vmatpush1.msra.mxu0 0.0
    %175 = vmatprep.subr.mxu0 0.0
    %176 = vmatpush1.msra.mxu0 0.0
    %177 = vmatprep.subr.mxu0 0.0
    %178 = vmatpush1.msra.mxu0 0.0
    %179 = vmatprep.subr.mxu0 0.0
    %180 = vmatpush1.msra.mxu0 0.0
    %181 = vmatprep.subr.mxu0 0.0
    %182 = vmatpush1.msra.mxu0 0.0
    %183 = vmatprep.subr.mxu0 0.0
    %184 = vmatpush1.msra.mxu0 0.0
    %185 = vmatprep.subr.mxu0 0.0
    %186 = vmatpush1.msra.mxu0 0.0
    %187 = vmatprep.subr.mxu0 0.0
    %188 = vmatpush1.msra.mxu0 0.0
    %189 = vmatprep.subr.mxu0 0.0
    %190 = vmatpush1.msra.mxu0 0.0
    %191 = vmatprep.mubr.f32.mxu0 0.0
    %192 = vmatmul.mubr.f32.gmra.mrb[0].mxu0 %v122
    %v193 = vpop.f32.mrb[0].mxu0
    %v194 = vadd.f32 0.0, %v193
    %v195 = vpop.f32.mrb[0].mxu0
    %196 = vmatprep.mubr.f32.mxu0 0.0
    %197 = vmatmul.mubr.f32.gmra.mrb[0].mxu0 %v125
    %v198 = vpop.f32.mrb[0].mxu0
    %v199 = vadd.f32 0.0, %v198
    %v200 = vpop.f32.mrb[0].mxu0
    %201 = vdwg.mxu0
    %vm202 = vcmp.ge.f32.partialorder %v194, 0.0
    %vm203 = vcmp.ge.f32.partialorder %v199, 0.0
    %v204 = vmul.f32 %v194, 0.5
    %v205 = vmul.f32 %v199, 0.5
    %v206 = vsel %vm202, %v194, %v204
    %v207 = vsel %vm203, %v199, %v205
    %208 = vxpose.xlu0.b32.start [1/16] %v104, 128
    %209 = vxpose.xlu0.b32.cont [2/16] %v109, 128
    %210 = vxpose.xlu0.b32.cont [3/16] 0.0, 128
    %211 = vxpose.xlu0.b32.cont [4/16] 0.0, 128
    %212 = vxpose.xlu0.b32.cont [5/16] 0.0, 128
    %213 = vxpose.xlu0.b32.cont [6/16] 0.0, 128
    %214 = vxpose.xlu0.b32.cont [7/16] 0.0, 128
    %215 = vxpose.xlu0.b32.cont [8/16] 0.0, 128
    %216 = vxpose.xlu0.b32.cont [9/16] 0.0, 128
    %217 = vxpose.xlu0.b32.cont [10/16] 0.0, 128
    %218 = vxpose.xlu0.b32.cont [11/16] 0.0, 128
    %219 = vxpose.xlu0.b32.cont [12/16] 0.0, 128
    %220 = vxpose.xlu0.b32.cont [13/16] 0.0, 128
    %221 = vxpose.xlu0.b32.cont [14/16] 0.0, 128
    %222 = vxpose.xlu0.b32.cont [15/16] 0.0, 128
    %223 = vxpose.xlu0.b32.end [16/16] 0.0, 128
    %v224 = vpop.trf.xlu0
    %v225 = vpop.trf.xlu0
    %v226 = vpop.trf.xlu0
    %v227 = vpop.trf.xlu0
    %v228 = vpop.trf.xlu0
    %v229 = vpop.trf.xlu0
    %v230 = vpop.trf.xlu0
    %v231 = vpop.trf.xlu0
    %v232 = vpop.trf.xlu0
    %v233 = vpop.trf.xlu0
    %v234 = vpop.trf.xlu0
    %v235 = vpop.trf.xlu0
    %v236 = vpop.trf.xlu0
    %v237 = vpop.trf.xlu0
    %v238 = vpop.trf.xlu0
    %v239 = vpop.trf.xlu0
    %v241 = vsel %vm120, %v224, 0
    %v244 = vsel %vm120, %v225, 0
    %246 = vmatprep.subr.mxu0 0.0
    %247 = vmatpush1.msra.mxu0 %v24
    %248 = vmatprep.subr.mxu0 0.0
    %249 = vmatpush1.msra.mxu0 %v25
    %250 = vmatprep.subr.mxu0 0.0
    %251 = vmatpush1.msra.mxu0 0.0
    %252 = vmatprep.subr.mxu0 0.0
    %253 = vmatpush1.msra.mxu0 0.0
    %254 = vmatprep.subr.mxu0 0.0
    %255 = vmatpush1.msra.mxu0 0.0
    %256 = vmatprep.subr.mxu0 0.0
    %257 = vmatpush1.msra.mxu0 0.0
    %258 = vmatprep.subr.mxu0 0.0
    %259 = vmatpush1.msra.mxu0 0.0
    %260 = vmatprep.subr.mxu0 0.0
    %261 = vmatpush1.msra.mxu0 0.0
    %262 = vmatprep.subr.mxu0 0.0
    %263 = vmatpush1.msra.mxu0 0.0
    %264 = vmatprep.subr.mxu0 0.0
    %265 = vmatpush1.msra.mxu0 0.0
    %266 = vmatprep.subr.mxu0 0.0
    %267 = vmatpush1.msra.mxu0 0.0
    %268 = vmatprep.subr.mxu0 0.0
    %269 = vmatpush1.msra.mxu0 0.0
    %270 = vmatprep.subr.mxu0 0.0
    %271 = vmatpush1.msra.mxu0 0.0
    %272 = vmatprep.subr.mxu0 0.0
    %273 = vmatpush1.msra.mxu0 0.0
    %274 = vmatprep.subr.mxu0 0.0
    %275 = vmatpush1.msra.mxu0 0.0
    %276 = vmatprep.subr.mxu0 0.0
    %277 = vmatpush1.msra.mxu0 0.0
    %278 = vmatprep.subr.mxu0 0.0
    %279 = vmatpush1.msra.mxu0 0.0
    %280 = vmatprep.subr.mxu0 0.0
    %281 = vmatpush1.msra.mxu0 0.0
    %282 = vmatprep.subr.mxu0 0.0
    %283 = vmatpush1.msra.mxu0 0.0
    %284 = vmatprep.subr.mxu0 0.0
    %285 = vmatpush1.msra.mxu0 0.0
    %286 = vmatprep.subr.mxu0 0.0
    %287 = vmatpush1.msra.mxu0 0.0
    %288 = vmatprep.subr.mxu0 0.0
    %289 = vmatpush1.msra.mxu0 0.0
    %290 = vmatprep.subr.mxu0 0.0
    %291 = vmatpush1.msra.mxu0 0.0
    %292 = vmatprep.subr.mxu0 0.0
    %293 = vmatpush1.msra.mxu0 0.0
    %294 = vmatprep.subr.mxu0 0.0
    %295 = vmatpush1.msra.mxu0 0.0
    %296 = vmatprep.subr.mxu0 0.0
    %297 = vmatpush1.msra.mxu0 0.0
    %298 = vmatprep.subr.mxu0 0.0
    %299 = vmatpush1.msra.mxu0 0.0
    %300 = vmatprep.subr.mxu0 0.0
    %301 = vmatpush1.msra.mxu0 0.0
    %302 = vmatprep.subr.mxu0 0.0
    %303 = vmatpush1.msra.mxu0 0.0
    %304 = vmatprep.subr.mxu0 0.0
    %305 = vmatpush1.msra.mxu0 0.0
    %306 = vmatprep.subr.mxu0 0.0
    %307 = vmatpush1.msra.mxu0 0.0
    %308 = vmatprep.subr.mxu0 0.0
    %309 = vmatpush1.msra.mxu0 0.0
    %310 = vmatprep.mubr.f32.mxu0 0.0
    %311 = vmatmul.mubr.f32.gmra.mrb[0].mxu0 %v241
    %v312 = vpop.f32.mrb[0].mxu0
    %v313 = vadd.f32 0.0, %v312
    %v314 = vpop.f32.mrb[0].mxu0
    %315 = vmatprep.mubr.f32.mxu0 0.0
    %316 = vmatmul.mubr.f32.gmra.mrb[0].mxu0 %v244
    %v317 = vpop.f32.mrb[0].mxu0
    %v318 = vadd.f32 0.0, %v317
    %v319 = vpop.f32.mrb[0].mxu0
    %320 = vdwg.mxu0
    %vm321 = vcmp.ge.f32.partialorder %v313, 0.0
    %vm322 = vcmp.ge.f32.partialorder %v318, 0.0
    %v323 = vmul.f32 %v313, 0.5
    %v324 = vmul.f32 %v318, 0.5
    %v325 = vsel %vm321, %v313, %v323
    %v326 = vsel %vm322, %v318, %v324
    %v328 = vsel %vm120, %v104, 0
    %v331 = vsel %vm120, %v109, 0
    %333 = vmatprep.subr.mxu0 0.0
    %334 = vmatpush1.msra.mxu0 %v325
    %335 = vmatprep.subr.mxu0 0.0
    %336 = vmatpush1.msra.mxu0 %v326
    %337 = vmatprep.subr.mxu0 0.0
    %338 = vmatpush1.msra.mxu0 0.0
    %339 = vmatprep.subr.mxu0 0.0
    %340 = vmatpush1.msra.mxu0 0.0
    %341 = vmatprep.subr.mxu0 0.0
    %342 = vmatpush1.msra.mxu0 0.0
    %343 = vmatprep.subr.mxu0 0.0
    %344 = vmatpush1.msra.mxu0 0.0
    %345 = vmatprep.subr.mxu0 0.0
    %346 = vmatpush1.msra.mxu0 0.0
    %347 = vmatprep.subr.mxu0 0.0
    %348 = vmatpush1.msra.mxu0 0.0
    %349 = vmatprep.subr.mxu0 0.0
    %350 = vmatpush1.msra.mxu0 0.0
    %351 = vmatprep.subr.mxu0 0.0
    %352 = vmatpush1.msra.mxu0 0.0
    %353 = vmatprep.subr.mxu0 0.0
    %354 = vmatpush1.msra.mxu0 0.0
    %355 = vmatprep.subr.mxu0 0.0
    %356 = vmatpush1.msra.mxu0 0.0
    %357 = vmatprep.subr.mxu0 0.0
    %358 = vmatpush1.msra.mxu0 0.0
    %359 = vmatprep.subr.mxu0 0.0
    %360 = vmatpush1.msra.mxu0 0.0
    %361 = vmatprep.subr.mxu0 0.0
    %362 = vmatpush1.msra.mxu0 0.0
    %363 = vmatprep.subr.mxu0 0.0
    %364 = vmatpush1.msra.mxu0 0.0
    %365 = vmatprep.subr.mxu0 0.0
    %366 = vmatpush1.msra.mxu0 0.0
    %367 = vmatprep.subr.mxu0 0.0
    %368 = vmatpush1.msra.mxu0 0.0
    %369 = vmatprep.subr.mxu0 0.0
    %370 = vmatpush1.msra.mxu0 0.0
    %371 = vmatprep.subr.mxu0 0.0
    %372 = vmatpush1.msra.mxu0 0.0
    %373 = vmatprep.subr.mxu0 0.0
    %374 = vmatpush1.msra.mxu0 0.0
    %375 = vmatprep.subr.mxu0 0.0
    %376 = vmatpush1.msra.mxu0 0.0
    %377 = vmatprep.subr.mxu0 0.0
    %378 = vmatpush1.msra.mxu0 0.0
    %379 = vmatprep.subr.mxu0 0.0
    %380 = vmatpush1.msra.mxu0 0.0
    %381 = vmatprep.subr.mxu0 0.0
    %382 = vmatpush1.msra.mxu0 0.0
    %383 = vmatprep.subr.mxu0 0.0
    %384 = vmatpush1.msra.mxu0 0.0
    %385 = vmatprep.subr.mxu0 0.0
    %386 = vmatpush1.msra.mxu0 0.0
    %387 = vmatprep.subr.mxu0 0.0
    %388 = vmatpush1.msra.mxu0 0.0
    %389 = vmatprep.subr.mxu0 0.0
    %390 = vmatpush1.msra.mxu0 0.0
    %391 = vmatprep.subr.mxu0 0.0
    %392 = vmatpush1.msra.mxu0 0.0
    %393 = vmatprep.subr.mxu0 0.0
    %394 = vmatpush1.msra.mxu0 0.0
    %395 = vmatprep.subr.mxu0 0.0
    %396 = vmatpush1.msra.mxu0 0.0
    %397 = vmatprep.mubr.f32.mxu0 0.0
    %398 = vmatmul.mubr.f32.gmra.mrb[0].mxu0 %v328
    %v399 = vpop.f32.mrb[0].mxu0
    %v400 = vadd.f32 0.0, %v399
    %v401 = vpop.f32.mrb[0].mxu0
    %402 = vmatprep.mubr.f32.mxu0 0.0
    %403 = vmatmul.mubr.f32.gmra.mrb[0].mxu0 %v331
    %v404 = vpop.f32.mrb[0].mxu0
    %v405 = vadd.f32 0.0, %v404
    %v406 = vpop.f32.mrb[0].mxu0
    %407 = vdwg.mxu0
    %vm408 = vcmp.ge.f32.partialorder %v400, 0.0
    %vm409 = vcmp.ge.f32.partialorder %v405, 0.0
    %v410 = vmul.f32 %v400, 0.5
    %v411 = vmul.f32 %v405, 0.5
    %v412 = vsel %vm408, %v400, %v410
    %v413 = vsel %vm409, %v405, %v411
    %414 = vst.msk [vmem:[#allocation4] sm:$0xff] %vm30, %v412
    %415 = vst.msk [vmem:[#allocation4 + $0x8] sm:$0xff] %vm30, %v413
    %v416 = vadd.f32 %v412, %v206
    %v417 = vadd.f32 %v413, %v207
    %v418 = vmul.f32 %v416, %v116
    %v419 = vmul.f32 %v417, %v117
    %420 = vmatprep.subr.mxu0 0.0
    %421 = vmatpush1.msra.mxu0 %v418
    %422 = vmatprep.subr.mxu0 0.0
    %423 = vmatpush1.msra.mxu0 %v419
    %424 = vmatprep.subr.mxu0 0.0
    %425 = vmatpush1.msra.mxu0 0.0
    %426 = vmatprep.subr.mxu0 0.0
    %427 = vmatpush1.msra.mxu0 0.0
    %428 = vmatprep.subr.mxu0 0.0
    %429 = vmatpush1.msra.mxu0 0.0
    %430 = vmatprep.subr.mxu0 0.0
    %431 = vmatpush1.msra.mxu0 0.0
    %432 = vmatprep.subr.mxu0 0.0
    %433 = vmatpush1.msra.mxu0 0.0
    %434 = vmatprep.subr.mxu0 0.0
    %435 = vmatpush1.msra.mxu0 0.0
    %436 = vmatprep.subr.mxu0 0.0
    %437 = vmatpush1.msra.mxu0 0.0
    %438 = vmatprep.subr.mxu0 0.0
    %439 = vmatpush1.msra.mxu0 0.0
    %440 = vmatprep.subr.mxu0 0.0
    %441 = vmatpush1.msra.mxu0 0.0
    %442 = vmatprep.subr.mxu0 0.0
    %443 = vmatpush1.msra.mxu0 0.0
    %444 = vmatprep.subr.mxu0 0.0
    %445 = vmatpush1.msra.mxu0 0.0
    %446 = vmatprep.subr.mxu0 0.0
    %447 = vmatpush1.msra.mxu0 0.0
    %448 = vmatprep.subr.mxu0 0.0
    %449 = vmatpush1.msra.mxu0 0.0
    %450 = vmatprep.subr.mxu0 0.0
    %451 = vmatpush1.msra.mxu0 0.0
    %452 = vmatprep.subr.mxu0 0.0
    %453 = vmatpush1.msra.mxu0 0.0
    %454 = vmatprep.subr.mxu0 0.0
    %455 = vmatpush1.msra.mxu0 0.0
    %456 = vmatprep.subr.mxu0 0.0
    %457 = vmatpush1.msra.mxu0 0.0
    %458 = vmatprep.subr.mxu0 0.0
    %459 = vmatpush1.msra.mxu0 0.0
    %460 = vmatprep.subr.mxu0 0.0
    %461 = vmatpush1.msra.mxu0 0.0
    %462 = vmatprep.subr.mxu0 0.0
    %463 = vmatpush1.msra.mxu0 0.0
    %464 = vmatprep.subr.mxu0 0.0
    %465 = vmatpush1.msra.mxu0 0.0
    %466 = vmatprep.subr.mxu0 0.0
    %467 = vmatpush1.msra.mxu0 0.0
    %468 = vmatprep.subr.mxu0 0.0
    %469 = vmatpush1.msra.mxu0 0.0
    %470 = vmatprep.subr.mxu0 0.0
    %471 = vmatpush1.msra.mxu0 0.0
    %472 = vmatprep.subr.mxu0 0.0
    %473 = vmatpush1.msra.mxu0 0.0
    %474 = vmatprep.subr.mxu0 0.0
    %475 = vmatpush1.msra.mxu0 0.0
    %476 = vmatprep.subr.mxu0 0.0
    %477 = vmatpush1.msra.mxu0 0.0
    %478 = vmatprep.subr.mxu0 0.0
    %479 = vmatpush1.msra.mxu0 0.0
    %480 = vmatprep.subr.mxu0 0.0
    %481 = vmatpush1.msra.mxu0 0.0
    %482 = vmatprep.subr.mxu0 0.0
    %483 = vmatpush1.msra.mxu0 0.0
    %484 = vmatprep.mubr.f32.mxu0 0.0
    %485 = vmatmul.mubr.f32.gmra.mrb[0].mxu0 %v122
    %v486 = vpop.f32.mrb[0].mxu0
    %v487 = vadd.f32 0.0, %v486
    %v488 = vpop.f32.mrb[0].mxu0
    %489 = vmatprep.mubr.f32.mxu0 0.0
    %490 = vmatmul.mubr.f32.gmra.mrb[0].mxu0 %v125
    %v491 = vpop.f32.mrb[0].mxu0
    %v492 = vadd.f32 0.0, %v491
    %v493 = vpop.f32.mrb[0].mxu0
    %494 = vdwg.mxu0
    %vm495 = vcmp.ge.f32.partialorder %v487, 0.0
    %vm496 = vcmp.ge.f32.partialorder %v492, 0.0
    %v497 = vmul.f32 %v487, 0.5
    %v498 = vmul.f32 %v492, 0.5
    %v499 = vsel %vm495, %v487, %v497
    %v500 = vsel %vm496, %v492, %v498
    %501 = vmatprep.subr.mxu0 0.0
    %502 = vmatpush1.msra.mxu0 %v416
    %503 = vmatprep.subr.mxu0 0.0
    %504 = vmatpush1.msra.mxu0 %v417
    %505 = vmatprep.subr.mxu0 0.0
    %506 = vmatpush1.msra.mxu0 0.0
    %507 = vmatprep.subr.mxu0 0.0
    %508 = vmatpush1.msra.mxu0 0.0
    %509 = vmatprep.subr.mxu0 0.0
    %510 = vmatpush1.msra.mxu0 0.0
    %511 = vmatprep.subr.mxu0 0.0
    %512 = vmatpush1.msra.mxu0 0.0
    %513 = vmatprep.subr.mxu0 0.0
    %514 = vmatpush1.msra.mxu0 0.0
    %515 = vmatprep.subr.mxu0 0.0
    %516 = vmatpush1.msra.mxu0 0.0
    %517 = vmatprep.subr.mxu0 0.0
    %518 = vmatpush1.msra.mxu0 0.0
    %519 = vmatprep.subr.mxu0 0.0
    %520 = vmatpush1.msra.mxu0 0.0
    %521 = vmatprep.subr.mxu0 0.0
    %522 = vmatpush1.msra.mxu0 0.0
    %523 = vmatprep.subr.mxu0 0.0
    %524 = vmatpush1.msra.mxu0 0.0
    %525 = vmatprep.subr.mxu0 0.0
    %526 = vmatpush1.msra.mxu0 0.0
    %527 = vmatprep.subr.mxu0 0.0
    %528 = vmatpush1.msra.mxu0 0.0
    %529 = vmatprep.subr.mxu0 0.0
    %530 = vmatpush1.msra.mxu0 0.0
    %531 = vmatprep.subr.mxu0 0.0
    %532 = vmatpush1.msra.mxu0 0.0
    %533 = vmatprep.subr.mxu0 0.0
    %534 = vmatpush1.msra.mxu0 0.0
    %535 = vmatprep.subr.mxu0 0.0
    %536 = vmatpush1.msra.mxu0 0.0
    %537 = vmatprep.subr.mxu0 0.0
    %538 = vmatpush1.msra.mxu0 0.0
    %539 = vmatprep.subr.mxu0 0.0
    %540 = vmatpush1.msra.mxu0 0.0
    %541 = vmatprep.subr.mxu0 0.0
    %542 = vmatpush1.msra.mxu0 0.0
    %543 = vmatprep.subr.mxu0 0.0
    %544 = vmatpush1.msra.mxu0 0.0
    %545 = vmatprep.subr.mxu0 0.0
    %546 = vmatpush1.msra.mxu0 0.0
    %547 = vmatprep.subr.mxu0 0.0
    %548 = vmatpush1.msra.mxu0 0.0
    %549 = vmatprep.subr.mxu0 0.0
    %550 = vmatpush1.msra.mxu0 0.0
    %551 = vmatprep.subr.mxu0 0.0
    %552 = vmatpush1.msra.mxu0 0.0
    %553 = vmatprep.subr.mxu0 0.0
    %554 = vmatpush1.msra.mxu0 0.0
    %555 = vmatprep.subr.mxu0 0.0
    %556 = vmatpush1.msra.mxu0 0.0
    %557 = vmatprep.subr.mxu0 0.0
    %558 = vmatpush1.msra.mxu0 0.0
    %559 = vmatprep.subr.mxu0 0.0
    %560 = vmatpush1.msra.mxu0 0.0
    %561 = vmatprep.subr.mxu0 0.0
    %562 = vmatpush1.msra.mxu0 0.0
    %563 = vmatprep.subr.mxu0 0.0
    %564 = vmatpush1.msra.mxu0 0.0
    %565 = vmatprep.mubr.f32.mxu0 0.0
    %566 = vmatmul.mubr.f32.gmra.mrb[0].mxu0 %v241
    %v567 = vpop.f32.mrb[0].mxu0
    %v568 = vadd.f32 0.0, %v567
    %v569 = vpop.f32.mrb[0].mxu0
    %570 = vmatprep.mubr.f32.mxu0 0.0
    %571 = vmatmul.mubr.f32.gmra.mrb[0].mxu0 %v244
    %v572 = vpop.f32.mrb[0].mxu0
    %v573 = vadd.f32 0.0, %v572
    %v574 = vpop.f32.mrb[0].mxu0
    %575 = vdwg.mxu0
    %vm576 = vcmp.ge.f32.partialorder %v568, 0.0
    %vm577 = vcmp.ge.f32.partialorder %v573, 0.0
    %v578 = vmul.f32 %v568, 0.5
    %v579 = vmul.f32 %v573, 0.5
    %v580 = vsel %vm576, %v568, %v578
    %v581 = vsel %vm577, %v573, %v579
    %582 = vmatprep.subr.mxu0 0.0
    %583 = vmatpush1.msra.mxu0 %v580
    %584 = vmatprep.subr.mxu0 0.0
    %585 = vmatpush1.msra.mxu0 %v581
    %586 = vmatprep.subr.mxu0 0.0
    %587 = vmatpush1.msra.mxu0 0.0
    %588 = vmatprep.subr.mxu0 0.0
    %589 = vmatpush1.msra.mxu0 0.0
    %590 = vmatprep.subr.mxu0 0.0
    %591 = vmatpush1.msra.mxu0 0.0
    %592 = vmatprep.subr.mxu0 0.0
    %593 = vmatpush1.msra.mxu0 0.0
    %594 = vmatprep.subr.mxu0 0.0
    %595 = vmatpush1.msra.mxu0 0.0
    %596 = vmatprep.subr.mxu0 0.0
    %597 = vmatpush1.msra.mxu0 0.0
    %598 = vmatprep.subr.mxu0 0.0
    %599 = vmatpush1.msra.mxu0 0.0
    %600 = vmatprep.subr.mxu0 0.0
    %601 = vmatpush1.msra.mxu0 0.0
    %602 = vmatprep.subr.mxu0 0.0
    %603 = vmatpush1.msra.mxu0 0.0
    %604 = vmatprep.subr.mxu0 0.0
    %605 = vmatpush1.msra.mxu0 0.0
    %606 = vmatprep.subr.mxu0 0.0
    %607 = vmatpush1.msra.mxu0 0.0
    %608 = vmatprep.subr.mxu0 0.0
    %609 = vmatpush1.msra.mxu0 0.0
    %610 = vmatprep.subr.mxu0 0.0
    %611 = vmatpush1.msra.mxu0 0.0
    %612 = vmatprep.subr.mxu0 0.0
    %613 = vmatpush1.msra.mxu0 0.0
    %614 = vmatprep.subr.mxu0 0.0
    %615 = vmatpush1.msra.mxu0 0.0
    %616 = vmatprep.subr.mxu0 0.0
    %617 = vmatpush1.msra.mxu0 0.0
    %618 = vmatprep.subr.mxu0 0.0
    %619 = vmatpush1.msra.mxu0 0.0
    %620 = vmatprep.subr.mxu0 0.0
    %621 = vmatpush1.msra.mxu0 0.0
    %622 = vmatprep.subr.mxu0 0.0
    %623 = vmatpush1.msra.mxu0 0.0
    %624 = vmatprep.subr.mxu0 0.0
    %625 = vmatpush1.msra.mxu0 0.0
    %626 = vmatprep.subr.mxu0 0.0
    %627 = vmatpush1.msra.mxu0 0.0
    %628 = vmatprep.subr.mxu0 0.0
    %629 = vmatpush1.msra.mxu0 0.0
    %630 = vmatprep.subr.mxu0 0.0
    %631 = vmatpush1.msra.mxu0 0.0
    %632 = vmatprep.subr.mxu0 0.0
    %633 = vmatpush1.msra.mxu0 0.0
    %634 = vmatprep.subr.mxu0 0.0
    %635 = vmatpush1.msra.mxu0 0.0
    %636 = vmatprep.subr.mxu0 0.0
    %637 = vmatpush1.msra.mxu0 0.0
    %638 = vmatprep.subr.mxu0 0.0
    %639 = vmatpush1.msra.mxu0 0.0
    %640 = vmatprep.subr.mxu0 0.0
    %641 = vmatpush1.msra.mxu0 0.0
    %642 = vmatprep.subr.mxu0 0.0
    %643 = vmatpush1.msra.mxu0 0.0
    %644 = vmatprep.subr.mxu0 0.0
    %645 = vmatpush1.msra.mxu0 0.0
    %646 = vmatprep.mubr.f32.mxu0 0.0
    %647 = vmatmul.mubr.f32.gmra.mrb[0].mxu0 %v328
    %v648 = vpop.f32.mrb[0].mxu0
    %v649 = vadd.f32 0.0, %v648
    %v650 = vpop.f32.mrb[0].mxu0
    %651 = vmatprep.mubr.f32.mxu0 0.0
    %652 = vmatmul.mubr.f32.gmra.mrb[0].mxu0 %v331
    %v653 = vpop.f32.mrb[0].mxu0
    %v654 = vadd.f32 0.0, %v653
    %v655 = vpop.f32.mrb[0].mxu0
    %656 = vdwg.mxu0
    %vm657 = vcmp.ge.f32.partialorder %v649, 0.0
    %vm658 = vcmp.ge.f32.partialorder %v654, 0.0
    %v659 = vmul.f32 %v649, 0.5
    %v660 = vmul.f32 %v654, 0.5
    %v661 = vsel %vm657, %v649, %v659
    %v662 = vsel %vm658, %v654, %v660
    %663 = vst.msk [vmem:[#allocation6] sm:$0xff] %vm30, %v661
    %664 = vst.msk [vmem:[#allocation6 + $0x8] sm:$0xff] %vm30, %v662
    %665 = vst.msk [vmem:[#allocation2] sm:$0xff] %vm30, %v499
    %666 = vst.msk [vmem:[#allocation2 + $0x8] sm:$0xff] %vm30, %v500
    // Predicated region
    $region18: #{org_model_forward.1} parent=1 // pred_check
      _
    $region19: #{org_model_forward.1} parent=1 // pred_check_branch
      %668 = sbr.rel (0) target = $region21
    $region20: #{org_model_forward.1} parent=1 // pred_region
      %s670 = ssub.s32 256, 256
      %671 = vsyncadd [#allocation3], %s670
      %s672 = sshll.u32 [#allocation2], 4
      %s673 = int_to_ptr.vmem [resolvable:$true] %s672
      %678 = dma.vmem_to_hbm [thread:$0]  %s673, 256, %s4, [#allocation3], 128, 128, 8
    $region21: #{org_model_forward.1} parent=1 // pred_fallthru
      _
    // Predicated region
    $region22: #{org_model_forward.1} parent=1 // pred_check
      _
    $region23: #{org_model_forward.1} parent=1 // pred_check_branch
      %680 = sbr.rel (0) target = $region25
    $region24: #{org_model_forward.1} parent=1 // pred_region
      %s682 = ssub.s32 256, 256
      %683 = vsyncadd [#allocation5], %s682
      %s684 = sshll.u32 [#allocation4], 4
      %s685 = int_to_ptr.vmem [resolvable:$true] %s684
      %690 = dma.vmem_to_hbm [thread:$0]  %s685, 256, %s5, [#allocation5], 128, 128, 8
    $region25: #{org_model_forward.1} parent=1 // pred_fallthru
      _
    // Predicated region
    $region26: #{org_model_forward.1} parent=1 // pred_check
      _
    $region27: #{org_model_forward.1} parent=1 // pred_check_branch
      %692 = sbr.rel (0) target = $region29
    $region28: #{org_model_forward.1} parent=1 // pred_region
      %s694 = ssub.s32 256, 256
      %695 = vsyncadd [#allocation5], %s694
      %s696 = sshll.u32 [#allocation6], 4
      %s697 = int_to_ptr.vmem [resolvable:$true] %s696
      %702 = dma.vmem_to_hbm [thread:$0]  %s697, 256, %s6, [#allocation5], 128, 128, 8
    $region29: #{org_model_forward.1} parent=1 // pred_fallthru
      _
    // Predicated region
    $region30: #{org_model_forward.1} parent=1 // pred_check
      _
    $region31: #{org_model_forward.1} parent=1 // pred_check_branch
      %704 = sbr.rel (0) target = $region33
    $region32: #{org_model_forward.1} parent=1 // pred_region
      %705 = dma.done [#allocation3], 256
    $region33: #{org_model_forward.1} parent=1 // pred_fallthru
      _
    // Predicated region
    $region34: #{org_model_forward.1} parent=1 // pred_check
      _
    $region35: #{org_model_forward.1} parent=1 // pred_check_branch
      %707 = sbr.rel (0) target = $region37
    $region36: #{org_model_forward.1} parent=1 // pred_region
      %708 = dma.done [#allocation5], 256
    $region37: #{org_model_forward.1} parent=1 // pred_fallthru
      _
    // Predicated region
    $region38: #{org_model_forward.1} parent=1 // pred_check
      _
    $region39: #{org_model_forward.1} parent=1 // pred_check_branch
      %710 = sbr.rel (0) target = $region41
    $region40: #{org_model_forward.1} parent=1 // pred_region
      %711 = dma.done [#allocation5], 256
    $region41: #{org_model_forward.1} parent=1 // pred_fallthru
      _
    %712 = vsyncpa [#allocation3], 1
    %713 = vsyncpa [#allocation5], 1

</llo_original>
